<compile_context>
chip_gen: v5e
topology: v5e:2x2
jax: 0.10.0
libtpu: 0.0.40
codegen_flags: <defaults>
</compile_context>

<pallas_src>
import functools

import jax
import jax.numpy as jnp
from jax import lax
from jax.experimental import pallas as pl
from jax.experimental.pallas import tpu as pltpu

DATA_SPACING = (0.2, 0.2)   # [dH, dW]
SMOOTHNESS_WEIGHT = 1.0     # stored by the module, unused in forward


def _smoothness_kernel(x_ref, cwn_ref, cws_ref, cwp_ref, chn_ref, chs_ref, chp_ref,
                       out_ref, *, B, TB, CHUNK, W, HW, SUB, ragged):
    n_chunks = TB // CHUNK

    # Per-lane gradient coefficients, loaded once per grid step (outside the loop).
    cwn = cwn_ref[...]; cws = cws_ref[...]; cwp = cwp_ref[...]   # (1, HW)
    chn = chn_ref[...]; chs = chs_ref[...]; chp = chp_ref[...]   # (1, HW)

    def chunk_sq(r0):
        x = x_ref[pl.ds(r0, CHUNK), :].astype(jnp.float32)       # (CHUNK, HW)
        # Lane-axis rotations (XLU).  Positive shifts only (mod-HW equivalents).
        x_p1 = pltpu.roll(x, HW - 1, axis=1)    # lane k -> x[k+1]  (W neighbour +1)
        x_m1 = pltpu.roll(x, 1, axis=1)         # lane k -> x[k-1]  (W neighbour -1)
        x_pW = pltpu.roll(x, HW - W, axis=1)    # lane k -> x[k+W]  (H neighbour +1)
        x_mW = pltpu.roll(x, W, axis=1)         # lane k -> x[k-W]  (H neighbour -1)
        # np.gradient in coefficient form; wrapped edge lanes carry coefficient 0.
        g_w = x_p1 * cwn + x * cws + x_m1 * cwp
        g_h = x_pW * chn + x * chs + x_mW * chp
        return g_w * g_w + g_h * g_h            # (CHUNK, HW)

    def partial(sq):
        if SUB == 8:
            # Fold rows 8-at-a-time: pure VPU adds, no cross-sublane XLU reduce.
            return sq.reshape(CHUNK // 8, 8, HW).sum(axis=0).reshape(1, 8, HW)
        return jnp.sum(sq, axis=0, keepdims=True).reshape(1, 1, HW)

    out_ref[...] = jnp.zeros_like(out_ref)
    b0 = pl.program_id(0) * TB

    @pl.loop(0, n_chunks)
    def _(c):
        r0 = pl.multiple_of(c * CHUNK, CHUNK)
        if ragged:
            g0 = b0 + r0
            @pl.when(g0 < B)                        # skip fully-invalid chunks
            def _():
                sq = chunk_sq(r0)
                full = (g0 + CHUNK) <= B
                @pl.when(full)                      # common case: no mask at all
                def _():
                    out_ref[...] += partial(sq)
                @pl.when(jnp.logical_not(full))     # only the crossing chunk masks
                def _():
                    ridx = g0 + lax.broadcasted_iota(jnp.int32, (CHUNK, 1), 0)
                    out_ref[...] += partial(jnp.where(ridx < B, sq, 0.0))
        else:
            out_ref[...] += partial(chunk_sq(r0))


def _vmem_capacity_bytes():
    try:
        info = pltpu.get_tpu_info()
        cap = getattr(info, "vmem_capacity_bytes", None)
        if cap:
            return int(cap)
    except Exception:
        pass
    return 64 << 20   # conservative (v7x-sized) default


def _pick_tiles(B, HW, itemsize, block_batch, chunk_rows, vmem_cap):
    """Returns (TB, CHUNK, SUB): DMA-block rows, compute-chunk rows, partial height."""
    bytes_per_row = HW * itemsize

    # Compute-chunk: bounds the ~7 chunk-sized f32 roll/gradient temporaries.
    if chunk_rows is None:
        chunk_rows = ((1 << 20) // max(1, bytes_per_row)) // 8 * 8
    else:
        chunk_rows = (int(chunk_rows) // 8) * 8
    chunk_rows = max(8, chunk_rows)

    if block_batch is None:
        # DMA block: ~16 MiB on 128-MiB-VMEM parts (v5e/v6e), ~6 MiB on v7x (64 MiB).
        blk_target = (16 << 20) if vmem_cap >= (100 << 20) else (6 << 20)
        tb = max(chunk_rows,
                 (blk_target // max(1, bytes_per_row)) // chunk_rows * chunk_rows)
        # Keep >= 2 grid blocks for non-trivial workloads so the "parallel" grid
        # axis can actually split across v7x's two TensorCores.
        if tb >= B and B * bytes_per_row > (2 << 20):
            tb = ((-(-B // 2) + 7) // 8) * 8
    else:
        tb = max(1, int(block_batch))
        if tb < B and tb % 8 != 0:
            tb = ((tb + 7) // 8) * 8          # sublane block dims must be 8-aligned

    if tb >= B:
        tb = B

    if tb % 8 == 0:
        sub = 8
        chunk = min(chunk_rows, tb)
        while tb % chunk != 0:                 # terminates at 8 (tb % 8 == 0)
            chunk -= 8
    else:
        sub = 1                                # tiny / odd whole-batch block
        chunk = tb
    return tb, chunk, sub


def smoothness_loss(scalar, *, block_batch=None, chunk_rows=None, force_pallas=False):
    """scalar: (B, H, W) float -> scalar float32 loss (mean |grad|^2)."""
    B, H, W = scalar.shape
    assert H >= 2 and W >= 2, "finite-difference gradient needs >= 2 samples per axis"
    HW = H * W

    if scalar.dtype not in (jnp.float32, jnp.bfloat16):
        scalar = scalar.astype(jnp.float32)
    itemsize = scalar.dtype.itemsize

    # Tiny-input fallback: a pallas_call + separate final reduction costs more than
    # letting XLA fuse a few KiB of work into the surrounding graph.
    if not force_pallas and B * HW * itemsize < (128 << 10):
        s = scalar.astype(jnp.float32)
        g_h = jnp.gradient(s, DATA_SPACING[0], axis=1)
        g_w = jnp.gradient(s, DATA_SPACING[1], axis=2)
        return jnp.mean(g_h ** 2 + g_w ** 2)

    vmem_cap = _vmem_capacity_bytes()
    TB, CHUNK, SUB = _pick_tiles(B, HW, itemsize, block_batch, chunk_rows, vmem_cap)
    G = -(-B // TB)
    ragged = (B % TB) != 0

    x2 = scalar.reshape(B, HW)                 # free, row-major contiguous reshape

    # Per-lane np.gradient coefficients: interior +/-1/(2h), one-sided edges 1/h.
    hw = jnp.arange(HW, dtype=jnp.int32)

    def _coeffs(idx, n, h):
        inv_h, inv_2h = 1.0 / h, 1.0 / (2.0 * h)
        first, last = idx == 0, idx == n - 1
        c_next = jnp.where(last, 0.0, jnp.where(first, inv_h, inv_2h))
        c_self = jnp.where(first, -inv_h, jnp.where(last, inv_h, 0.0))
        c_prev = jnp.where(first, 0.0, jnp.where(last, -inv_h, -inv_2h))
        as_row = lambda c: c.reshape(1, HW).astype(jnp.float32)
        return as_row(c_next), as_row(c_self), as_row(c_prev)

    cwn, cws, cwp = _coeffs(hw % W, W, DATA_SPACING[1])    # W axis
    chn, chs, chp = _coeffs(hw // W, H, DATA_SPACING[0])   # H axis

    kernel = functools.partial(
        _smoothness_kernel,
        B=B, TB=TB, CHUNK=CHUNK, W=W, HW=HW, SUB=SUB, ragged=ragged)

    # Double-buffered input blocks + chunk-sized temporaries stay well below this.
    vmem_limit = min(int(vmem_cap) * 3 // 4, 96 << 20)

    coef_spec = pl.BlockSpec((1, HW), lambda i: (0, 0))
    partials = pl.pallas_call(
        kernel,
        out_shape=jax.ShapeDtypeStruct((G, SUB, HW), jnp.float32),
        grid_spec=pltpu.PrefetchScalarGridSpec(
            num_scalar_prefetch=0,
            grid=(G,),
            in_specs=[
                pl.BlockSpec((TB, HW), lambda i: (i, 0)),
                coef_spec, coef_spec, coef_spec,
                coef_spec, coef_spec, coef_spec,
            ],
            out_specs=pl.BlockSpec((1, SUB, HW), lambda i: (i, 0, 0)),
        ),
        compiler_params=pltpu.CompilerParams(
            dimension_semantics=("parallel",),      # v7x: 2 TCs split the batch
            vmem_limit_bytes=vmem_limit),
        cost_estimate=pl.CostEstimate(
            flops=13 * B * HW,
            transcendentals=0,
            bytes_accessed=B * HW * itemsize + (G * SUB + 6) * HW * 4),
    )(x2, cwn, cws, cwp, chn, chs, chp)

    # Tiny final reduction + mean in f32 on the host-side graph.
    return jnp.sum(partials) * (1.0 / float(B * H * W))


def _reference_loss(scalar):
    s = scalar.astype(jnp.float32)
    g_h = jnp.gradient(s, DATA_SPACING[0], axis=1)
    g_w = jnp.gradient(s, DATA_SPACING[1], axis=2)
    return jnp.mean(g_h ** 2 + g_w ** 2)


if __name__ == "__main__":
    k0, k1, k2 = jax.random.split(jax.random.PRNGKey(0), 3)

    # Case 1: module-scale input (batch=2, 16x16), forced through the Pallas path
    # (the default path would take the tiny-input jnp fallback).
    x1 = jax.random.normal(k0, (2, 16, 16), dtype=jnp.float32)
    l1 = smoothness_loss(x1, force_pallas=True)
    jax.block_until_ready(l1)
    r1 = _reference_loss(x1)
    assert jnp.allclose(l1, r1, rtol=1e-4, atol=1e-5), (l1, r1)

    # Case 2: multi-block "parallel" grid with a ragged last block
    # (B=13, TB=8 -> G=2; only the crossing chunk applies the batch mask).
    x2 = jax.random.normal(k1, (13, 16, 16), dtype=jnp.float32)
    l2 = smoothness_loss(x2, block_batch=8, force_pallas=True)
    jax.block_until_ready(l2)
    r2 = _reference_loss(x2)
    assert jnp.allclose(l2, r2, rtol=1e-4, atol=1e-5), (l2, r2)

    # Case 3: exercises the in-kernel chunk loop (TB=32, CHUNK=16 -> 2 chunks per
    # block) and the sublane-preserving (1, 8, HW) partial outputs.
    x3 = jax.random.normal(k2, (64, 32, 32), dtype=jnp.float32)
    l3 = smoothness_loss(x3, block_batch=32, chunk_rows=16, force_pallas=True)
    jax.block_until_ready(l3)
    r3 = _reference_loss(x3)
    assert jnp.allclose(l3, r3, rtol=1e-4, atol=1e-5), (l3, r3)

    print("KERNEL_OK")
</pallas_src>

<mosaic_0001>
module attributes {stable_mosaic.version = 11 : i64} {
  func.func @_smoothness_kernel(%arg0: i32, %arg1: memref<2x256xf32, #tpu.memory_space<vmem>>, %arg2: memref<1x256xf32, #tpu.memory_space<vmem>>, %arg3: memref<1x256xf32, #tpu.memory_space<vmem>>, %arg4: memref<1x256xf32, #tpu.memory_space<vmem>>, %arg5: memref<1x256xf32, #tpu.memory_space<vmem>>, %arg6: memref<1x256xf32, #tpu.memory_space<vmem>>, %arg7: memref<1x256xf32, #tpu.memory_space<vmem>>, %arg8: memref<1x1x256xf32, #tpu.memory_space<vmem>>) attributes {dimension_semantics = [#tpu.dimension_semantics<parallel>], iteration_bounds = array<i64: 1>, scalar_prefetch = 0 : i64, scratch_operands = 0 : i64, tpu.core_type = #tpu.core_type<tc>, window_params = [{transform_indices = @transform_0, window_bounds = array<i64: 2, 256>}, {pipeline_mode = #tpu.pipeline_mode<synchronous>, transform_indices = @transform_1, window_bounds = array<i64: 1, 256>}, {pipeline_mode = #tpu.pipeline_mode<synchronous>, transform_indices = @transform_2, window_bounds = array<i64: 1, 256>}, {pipeline_mode = #tpu.pipeline_mode<synchronous>, transform_indices = @transform_3, window_bounds = array<i64: 1, 256>}, {pipeline_mode = #tpu.pipeline_mode<synchronous>, transform_indices = @transform_4, window_bounds = array<i64: 1, 256>}, {pipeline_mode = #tpu.pipeline_mode<synchronous>, transform_indices = @transform_5, window_bounds = array<i64: 1, 256>}, {pipeline_mode = #tpu.pipeline_mode<synchronous>, transform_indices = @transform_6, window_bounds = array<i64: 1, 256>}, {transform_indices = @transform_7, window_bounds = array<i64: 1, 1, 256>}]} {
    %c0 = arith.constant 0 : index
    %c0_0 = arith.constant 0 : index
    %0 = vector.load %arg2[%c0, %c0_0] : memref<1x256xf32, #tpu.memory_space<vmem>>, vector<1x256xf32>
    %c0_1 = arith.constant 0 : index
    %c0_2 = arith.constant 0 : index
    %1 = vector.load %arg3[%c0_1, %c0_2] : memref<1x256xf32, #tpu.memory_space<vmem>>, vector<1x256xf32>
    %c0_3 = arith.constant 0 : index
    %c0_4 = arith.constant 0 : index
    %2 = vector.load %arg4[%c0_3, %c0_4] : memref<1x256xf32, #tpu.memory_space<vmem>>, vector<1x256xf32>
    %c0_5 = arith.constant 0 : index
    %c0_6 = arith.constant 0 : index
    %3 = vector.load %arg5[%c0_5, %c0_6] : memref<1x256xf32, #tpu.memory_space<vmem>>, vector<1x256xf32>
    %c0_7 = arith.constant 0 : index
    %c0_8 = arith.constant 0 : index
    %4 = vector.load %arg6[%c0_7, %c0_8] : memref<1x256xf32, #tpu.memory_space<vmem>>, vector<1x256xf32>
    %c0_9 = arith.constant 0 : index
    %c0_10 = arith.constant 0 : index
    %5 = vector.load %arg7[%c0_9, %c0_10] : memref<1x256xf32, #tpu.memory_space<vmem>>, vector<1x256xf32>
    %cst = arith.constant 0.000000e+00 : f32
    %6 = vector.broadcast %cst : f32 to vector<1x1x256xf32>
    %c0_11 = arith.constant 0 : index
    %c0_12 = arith.constant 0 : index
    %c0_13 = arith.constant 0 : index
    %7 = vector.load %arg8[%c0_11, %c0_12, %c0_13] : memref<1x1x256xf32, #tpu.memory_space<vmem>>, vector<1x1x256xf32>
    tpu.vector_store %arg8[%c0_11, %c0_12, %c0_13], %6 {strides = array<i32>} : memref<1x1x256xf32, #tpu.memory_space<vmem>>, vector<1x1x256xf32>,
    %c0_i32 = arith.constant 0 : i32
    %c1_i32 = arith.constant 1 : i32
    %8 = arith.muli %c0_i32, %c1_i32 : i32
    %c0_i32_14 = arith.constant 0 : i32
    %9 = arith.addi %c0_i32_14, %8 : i32
    %c2_i32 = arith.constant 2 : i32
    %10 = arith.muli %9, %c2_i32 : i32
    %11 = tpu.assume_multiple %10, 2 : i32
    %c0_15 = arith.constant 0 : index
    %c0_16 = arith.constant 0 : index
    %c0_17 = arith.constant 0 : index
    %12 = vector.load %arg8[%c0_15, %c0_16, %c0_17] : memref<1x1x256xf32, #tpu.memory_space<vmem>>, vector<1x1x256xf32>
    %13 = arith.index_cast %11 : i32 to index
    %c0_18 = arith.constant 0 : index
    %14 = vector.load %arg1[%13, %c0_18] : memref<2x256xf32, #tpu.memory_space<vmem>>, vector<2x256xf32>
    %c255_i32 = arith.constant 255 : i32
    %15 = tpu.dynamic_rotate %14 by %c255_i32 dim 1 : vector<2x256xf32>, i32 -> vector<2x256xf32>
    %c1_i32_19 = arith.constant 1 : i32
    %16 = tpu.dynamic_rotate %14 by %c1_i32_19 dim 1 : vector<2x256xf32>, i32 -> vector<2x256xf32>
    %c240_i32 = arith.constant 240 : i32
    %17 = tpu.dynamic_rotate %14 by %c240_i32 dim 1 : vector<2x256xf32>, i32 -> vector<2x256xf32>
    %c16_i32 = arith.constant 16 : i32
    %18 = tpu.dynamic_rotate %14 by %c16_i32 dim 1 : vector<2x256xf32>, i32 -> vector<2x256xf32>
    %19 = vector.broadcast %0 : vector<1x256xf32> to vector<2x256xf32>
    %20 = arith.mulf %15, %19 : vector<2x256xf32>
    %21 = vector.broadcast %1 : vector<1x256xf32> to vector<2x256xf32>
    %22 = arith.mulf %14, %21 : vector<2x256xf32>
    %23 = arith.addf %20, %22 : vector<2x256xf32>
    %24 = vector.broadcast %2 : vector<1x256xf32> to vector<2x256xf32>
    %25 = arith.mulf %16, %24 : vector<2x256xf32>
    %26 = arith.addf %23, %25 : vector<2x256xf32>
    %27 = vector.broadcast %3 : vector<1x256xf32> to vector<2x256xf32>
    %28 = arith.mulf %17, %27 : vector<2x256xf32>
    %29 = vector.broadcast %4 : vector<1x256xf32> to vector<2x256xf32>
    %30 = arith.mulf %14, %29 : vector<2x256xf32>
    %31 = arith.addf %28, %30 : vector<2x256xf32>
    %32 = vector.broadcast %5 : vector<1x256xf32> to vector<2x256xf32>
    %33 = arith.mulf %18, %32 : vector<2x256xf32>
    %34 = arith.addf %31, %33 : vector<2x256xf32>
    %35 = arith.mulf %26, %26 : vector<2x256xf32>
    %36 = arith.mulf %34, %34 : vector<2x256xf32>
    %37 = arith.addf %35, %36 : vector<2x256xf32>
    %cst_20 = arith.constant dense<0.000000e+00> : vector<256xf32>
    %38 = vector.multi_reduction <add>, %37, %cst_20 [0] : vector<2x256xf32> to vector<256xf32>
    %39 = vector.shape_cast %38 : vector<256xf32> to vector<1x256xf32>
    %40 = vector.shape_cast %39 : vector<1x256xf32> to vector<1x1x256xf32>
    %41 = arith.addf %12, %40 : vector<1x1x256xf32>
    %c0_21 = arith.constant 0 : index
    %c0_22 = arith.constant 0 : index
    %c0_23 = arith.constant 0 : index
    %42 = vector.load %arg8[%c0_21, %c0_22, %c0_23] : memref<1x1x256xf32, #tpu.memory_space<vmem>>, vector<1x1x256xf32>
    tpu.vector_store %arg8[%c0_21, %c0_22, %c0_23], %41 {strides = array<i32>} : memref<1x1x256xf32, #tpu.memory_space<vmem>>, vector<1x1x256xf32>,
    %c1_i32_24 = arith.constant 1 : i32
    return
  }
  func.func @transform_0(%arg0: i32) -> (i32, i32) {
    %c0_i32 = arith.constant 0 : i32
    %c0_i32_0 = arith.constant 0 : i32
    return %arg0, %c0_i32 : i32, i32
  }
  func.func @transform_1(%arg0: i32) -> (i32, i32) {
    %c0_i32 = arith.constant 0 : i32
    %c0_i32_0 = arith.constant 0 : i32
    %c0_i32_1 = arith.constant 0 : i32
    return %c0_i32, %c0_i32_0 : i32, i32
  }
  func.func @transform_2(%arg0: i32) -> (i32, i32) {
    %c0_i32 = arith.constant 0 : i32
    %c0_i32_0 = arith.constant 0 : i32
    %c0_i32_1 = arith.constant 0 : i32
    return %c0_i32, %c0_i32_0 : i32, i32
  }
  func.func @transform_3(%arg0: i32) -> (i32, i32) {
    %c0_i32 = arith.constant 0 : i32
    %c0_i32_0 = arith.constant 0 : i32
    %c0_i32_1 = arith.constant 0 : i32
    return %c0_i32, %c0_i32_0 : i32, i32
  }
  func.func @transform_4(%arg0: i32) -> (i32, i32) {
    %c0_i32 = arith.constant 0 : i32
    %c0_i32_0 = arith.constant 0 : i32
    %c0_i32_1 = arith.constant 0 : i32
    return %c0_i32, %c0_i32_0 : i32, i32
  }
  func.func @transform_5(%arg0: i32) -> (i32, i32) {
    %c0_i32 = arith.constant 0 : i32
    %c0_i32_0 = arith.constant 0 : i32
    %c0_i32_1 = arith.constant 0 : i32
    return %c0_i32, %c0_i32_0 : i32, i32
  }
  func.func @transform_6(%arg0: i32) -> (i32, i32) {
    %c0_i32 = arith.constant 0 : i32
    %c0_i32_0 = arith.constant 0 : i32
    %c0_i32_1 = arith.constant 0 : i32
    return %c0_i32, %c0_i32_0 : i32, i32
  }
  func.func @transform_7(%arg0: i32) -> (i32, i32, i32) {
    %c0_i32 = arith.constant 0 : i32
    %c0_i32_0 = arith.constant 0 : i32
    %c0_i32_1 = arith.constant 0 : i32
    return %arg0, %c0_i32, %c0_i32_0 : i32, i32, i32
  }
}

</mosaic_0001>

<llo_original>
// kernel: tpu_custom_call.1
$region0: #{tpu_custom_call.1}
  #allocation0 [shape = 'u32[]', space=smem, size = 0x4, offset = 0x4, fixed_abs, tag = 'smem constant byte address 0x4 - core index']
  #allocation1 [shape = 'u32[72,128]{1,0:T(1,128)}', space=vmem, size = 0x9000, scoped, tag = 'internal scratch']
  %s0 = inlined_call_operand.hbm [shape: f32[2,256], index: 0, kind: input, shape index: {}]
  %s1 = inlined_call_operand.hbm [shape: f32[1,256], index: 1, kind: input, shape index: {}]
  %s2 = inlined_call_operand.hbm [shape: f32[1,256], index: 2, kind: input, shape index: {}]
  %s3 = inlined_call_operand.vmem [shape: f32[1,256], index: 3, kind: input, shape index: {}]
  %s4 = inlined_call_operand.hbm [shape: f32[1,256], index: 4, kind: input, shape index: {}]
  %s5 = inlined_call_operand.vmem [shape: f32[1,256], index: 5, kind: input, shape index: {}]
  %s6 = inlined_call_operand.hbm [shape: f32[1,256], index: 6, kind: input, shape index: {}]
  %s7 = inlined_call_operand.hbm [shape: f32[1,1,256], index: 7, kind: output, shape index: {}]
  %s8 = sld [smem:[#allocation0]]
  $region58: #{tpu_custom_call.1} parent=0
    _
  %s10 = ssub.s32 1, %s8
  %s11 = scalar_select 0, %s10, %s8
  $region1: #{tpu_custom_call.1} parent=0
    #allocation2 [shape = 'u8[2048]{0}', space=vmem, size = 0x800, scoped, tag = 'input window, operand 0, single buffered']
    #allocation3 [shape = 's32[1]{0}', space=sflag, size = 0x4, scoped, tag = 'scoped memory for tpu_custom_call.1']
    #allocation4 [shape = 's32[1]{0}', space=sflag, size = 0x4, scoped, tag = 'scoped memory for tpu_custom_call.1']
    #allocation5 [shape = 'u8[1024]{0}', space=vmem, size = 0x400, scoped, tag = 'input window, operand 1, single buffered']
    #allocation6 [shape = 's32[1]{0}', space=sflag, size = 0x4, scoped, tag = 'scoped memory for tpu_custom_call.1']
    #allocation7 [shape = 'u8[1024]{0}', space=vmem, size = 0x400, scoped, tag = 'input window, operand 2, single buffered']
    #allocation8 [shape = 'u8[1024]{0}', space=vmem, size = 0x400, scoped, tag = 'input window, operand 4, single buffered']
    #allocation9 [shape = 's32[1]{0}', space=sflag, size = 0x4, scoped, tag = 'scoped memory for tpu_custom_call.1']
    #allocation10 [shape = 'u8[1024]{0}', space=vmem, size = 0x400, scoped, tag = 'input window, operand 6, single buffered']
    #allocation11 [shape = 'u8[1024]{0}', space=vmem, size = 0x400, scoped, tag = 'output window, operand 0, single buffered']
    %12 = vsyncpa [#allocation3], 0
    %13 = vsyncpa [#allocation6], 0
    %14 = vsyncpa [#allocation9], 0
    %15 = vsyncpa [#allocation4], 0
    // Predicated region
    $region2: #{tpu_custom_call.1} parent=1 // pred_check
      _
    $region3: #{tpu_custom_call.1} parent=1 // pred_check_branch
      %17 = sbr.rel (0) target = $region5
    $region4: #{tpu_custom_call.1} parent=1 // pred_region
      %19 = vsyncadd [#allocation3], 0
      %s21 = sshll.u32 %s0, 4
      %s22 = int_to_ptr.hbm [resolvable:$true] %s21
      %s23 = sshll.u32 [#allocation2], 4
      %s24 = int_to_ptr.vmem [resolvable:$true] %s23
      %26 = dma.hbm_to_vmem [thread:$0]  %s22, 64, %s24, [#allocation3]
    $region5: #{tpu_custom_call.1} parent=1 // pred_fallthru
      _
    // Predicated region
    $region6: #{tpu_custom_call.1} parent=1 // pred_check
      _
    $region7: #{tpu_custom_call.1} parent=1 // pred_check_branch
      %28 = sbr.rel (0) target = $region9
    $region8: #{tpu_custom_call.1} parent=1 // pred_region
      %30 = vsyncadd [#allocation6], 0
      %s32 = sshll.u32 %s1, 4
      %s33 = int_to_ptr.hbm [resolvable:$true] %s32
      %s34 = sshll.u32 [#allocation5], 4
      %s35 = int_to_ptr.vmem [resolvable:$true] %s34
      %37 = dma.hbm_to_vmem [thread:$0]  %s33, 32, %s35, [#allocation6]
    $region9: #{tpu_custom_call.1} parent=1 // pred_fallthru
      _
    // Predicated region
    $region10: #{tpu_custom_call.1} parent=1 // pred_check
      _
    $region11: #{tpu_custom_call.1} parent=1 // pred_check_branch
      %39 = sbr.rel (0) target = $region13
    $region12: #{tpu_custom_call.1} parent=1 // pred_region
      %41 = vsyncadd [#allocation6], 0
      %s43 = sshll.u32 %s2, 4
      %s44 = int_to_ptr.hbm [resolvable:$true] %s43
      %s45 = sshll.u32 [#allocation7], 4
      %s46 = int_to_ptr.vmem [resolvable:$true] %s45
      %48 = dma.hbm_to_vmem [thread:$0]  %s44, 32, %s46, [#allocation6]
    $region13: #{tpu_custom_call.1} parent=1 // pred_fallthru
      _
    // Predicated region
    $region14: #{tpu_custom_call.1} parent=1 // pred_check
      _
    $region15: #{tpu_custom_call.1} parent=1 // pred_check_branch
      %50 = sbr.rel (0) target = $region17
    $region16: #{tpu_custom_call.1} parent=1 // pred_region
      _
    $region17: #{tpu_custom_call.1} parent=1 // pred_fallthru
      _
    // Predicated region
    $region18: #{tpu_custom_call.1} parent=1 // pred_check
      _
    $region19: #{tpu_custom_call.1} parent=1 // pred_check_branch
      %52 = sbr.rel (0) target = $region21
    $region20: #{tpu_custom_call.1} parent=1 // pred_region
      %54 = vsyncadd [#allocation9], 0
      %s56 = sshll.u32 %s4, 4
      %s57 = int_to_ptr.hbm [resolvable:$true] %s56
      %s58 = sshll.u32 [#allocation8], 4
      %s59 = int_to_ptr.vmem [resolvable:$true] %s58
      %61 = dma.hbm_to_vmem [thread:$0]  %s57, 32, %s59, [#allocation9]
    $region21: #{tpu_custom_call.1} parent=1 // pred_fallthru
      _
    // Predicated region
    $region22: #{tpu_custom_call.1} parent=1 // pred_check
      _
    $region23: #{tpu_custom_call.1} parent=1 // pred_check_branch
      %63 = sbr.rel (0) target = $region25
    $region24: #{tpu_custom_call.1} parent=1 // pred_region
      _
    $region25: #{tpu_custom_call.1} parent=1 // pred_fallthru
      _
    // Predicated region
    $region26: #{tpu_custom_call.1} parent=1 // pred_check
      _
    $region27: #{tpu_custom_call.1} parent=1 // pred_check_branch
      %65 = sbr.rel (0) target = $region29
    $region28: #{tpu_custom_call.1} parent=1 // pred_region
      %67 = vsyncadd [#allocation9], 0
      %s69 = sshll.u32 %s6, 4
      %s70 = int_to_ptr.hbm [resolvable:$true] %s69
      %s71 = sshll.u32 [#allocation10], 4
      %s72 = int_to_ptr.vmem [resolvable:$true] %s71
      %74 = dma.hbm_to_vmem [thread:$0]  %s70, 32, %s72, [#allocation9]
    $region29: #{tpu_custom_call.1} parent=1 // pred_fallthru
      _
    // Predicated region
    $region30: #{tpu_custom_call.1} parent=1 // pred_check
      _
    $region31: #{tpu_custom_call.1} parent=1 // pred_check_branch
      %76 = sbr.rel (0) target = $region33
    $region32: #{tpu_custom_call.1} parent=1 // pred_region
      %78 = dma.done [#allocation3], 64
    $region33: #{tpu_custom_call.1} parent=1 // pred_fallthru
      _
    // Predicated region
    $region34: #{tpu_custom_call.1} parent=1 // pred_check
      _
    $region35: #{tpu_custom_call.1} parent=1 // pred_check_branch
      %80 = sbr.rel (0) target = $region37
    $region36: #{tpu_custom_call.1} parent=1 // pred_region
      %82 = dma.done [#allocation6], 32
    $region37: #{tpu_custom_call.1} parent=1 // pred_fallthru
      _
    // Predicated region
    $region38: #{tpu_custom_call.1} parent=1 // pred_check
      _
    $region39: #{tpu_custom_call.1} parent=1 // pred_check_branch
      %84 = sbr.rel (0) target = $region41
    $region40: #{tpu_custom_call.1} parent=1 // pred_region
      %86 = dma.done [#allocation6], 32
    $region41: #{tpu_custom_call.1} parent=1 // pred_fallthru
      _
    // Predicated region
    $region42: #{tpu_custom_call.1} parent=1 // pred_check
      _
    $region43: #{tpu_custom_call.1} parent=1 // pred_check_branch
      %88 = sbr.rel (0) target = $region45
    $region44: #{tpu_custom_call.1} parent=1 // pred_region
      %90 = dma.done [#allocation9], 32
    $region45: #{tpu_custom_call.1} parent=1 // pred_fallthru
      _
    // Predicated region
    $region46: #{tpu_custom_call.1} parent=1 // pred_check
      _
    $region47: #{tpu_custom_call.1} parent=1 // pred_check_branch
      %92 = sbr.rel (0) target = $region49
    $region48: #{tpu_custom_call.1} parent=1 // pred_region
      %94 = dma.done [#allocation9], 32
    $region49: #{tpu_custom_call.1} parent=1 // pred_fallthru
      _
    %v95 = vld [vmem:[#allocation5] sm:$0x3]
    %v96 = vld [vmem:[#allocation7] sm:$0x3]
    %v97 = vld [vmem:[%s3] sm:$0x3]
    %v98 = vld [vmem:[#allocation8] sm:$0x3]
    %v99 = vld [vmem:[%s5] sm:$0x3]
    %v100 = vld [vmem:[#allocation10] sm:$0x3]
    %v101 = vlaneseq
    %vm102 = vcmp.ge.s32.totalorder %v101, 0
    %vm103 = vcmp.lt.s32.totalorder %v101, 256
    %vm104 = vmand %vm102, %vm103
    %105 = vst.msk [vmem:[#allocation11] sm:$0x3] %vm104, 0.0
    %v106 = vld [vmem:[#allocation11] sm:$0x3]
    %s107 = smul.u32 0, 2
    %s108 = smul.addr %s107, 2
    %s109 = scalar_lea.vmem [#allocation2], %s108
    %v110 = vld [vmem:[%s109] sm:$0xf]
    %112 = vst [vmem:[#allocation1] ss:$4 sm:$0xff] %v110
    %v113 = vld.sshfl [vmem:[#allocation1] sm:$0xff pattern:$0x73625140]
    %v114 = vld.sshfl [vmem:[#allocation1 + $0x8] sm:$0xff pattern:$0x73625140]
    %117 = vrot.lane.b32.xlu0 %v113, 127
    %v118 = vpop.permute.xlu0 %117
    %119 = vrot.lane.b32.xlu0 %v114, 127
    %v120 = vpop.permute.xlu0 %119
    %v121 = vlaneseq
    %v122 = vand.u32 %v121, 127
    %vm123 = vcmp.lt.s32.totalorder %v122, 127
    %v124 = vsel %vm123, %v118, %v120
    %v125 = vsel %vm123, %v120, %v118
    %126 = vst [vmem:[#allocation1] ss:$4 sm:$0xff] %v110
    %v127 = vld.sshfl [vmem:[#allocation1] sm:$0xff pattern:$0x73625140]
    %v128 = vld.sshfl [vmem:[#allocation1 + $0x8] sm:$0xff pattern:$0x73625140]
    %131 = vrot.lane.b32.xlu0 %v127, 1
    %v132 = vpop.permute.xlu0 %131
    %133 = vrot.lane.b32.xlu0 %v128, 1
    %v134 = vpop.permute.xlu0 %133
    %vm135 = vcmp.lt.s32.totalorder %v122, 1
    %v136 = vsel %vm135, %v132, %v134
    %v137 = vsel %vm135, %v134, %v132
    %138 = vst [vmem:[#allocation1] ss:$4 sm:$0xff] %v110
    %v139 = vld.sshfl [vmem:[#allocation1] sm:$0xff pattern:$0x73625140]
    %v140 = vld.sshfl [vmem:[#allocation1 + $0x8] sm:$0xff pattern:$0x73625140]
    %143 = vrot.lane.b32.xlu0 %v139, 112
    %v144 = vpop.permute.xlu0 %143
    %145 = vrot.lane.b32.xlu0 %v140, 112
    %v146 = vpop.permute.xlu0 %145
    %vm147 = vcmp.lt.s32.totalorder %v122, 112
    %v148 = vsel %vm147, %v144, %v146
    %v149 = vsel %vm147, %v146, %v144
    %150 = vst [vmem:[#allocation1] ss:$4 sm:$0xff] %v110
    %v151 = vld.sshfl [vmem:[#allocation1] sm:$0xff pattern:$0x73625140]
    %v152 = vld.sshfl [vmem:[#allocation1 + $0x8] sm:$0xff pattern:$0x73625140]
    %155 = vrot.lane.b32.xlu0 %v151, 16
    %v156 = vpop.permute.xlu0 %155
    %157 = vrot.lane.b32.xlu0 %v152, 16
    %v158 = vpop.permute.xlu0 %157
    %vm159 = vcmp.lt.s32.totalorder %v122, 16
    %v160 = vsel %vm159, %v156, %v158
    %v161 = vsel %vm159, %v158, %v156
    %v163 = vperm.slane %v95, 0
    %v164 = vperm.slane %v95, 1
    %v167 = vmul.f32 %v124, %v163
    %v168 = vmul.f32 %v125, %v164
    %v170 = vperm.slane %v96, 0
    %v171 = vperm.slane %v96, 1
    %v172 = vrot.slane %v171, 6
    %vm173 = vcmask 1041408
    %v174 = vsel %vm173, %v170, %v172
    %v176 = vmul.f32 %v110, %v174
    %178 = vst [vmem:[#allocation1] ss:$4 sm:$0xff] %v176
    %v179 = vld.sshfl [vmem:[#allocation1] sm:$0xff pattern:$0x73625140]
    %v180 = vld.sshfl [vmem:[#allocation1 + $0x8] sm:$0xff pattern:$0x73625140]
    %v183 = vadd.f32 %v167, %v179
    %v184 = vadd.f32 %v168, %v180
    %v186 = vperm.slane %v97, 0
    %v187 = vperm.slane %v97, 1
    %v190 = vmul.f32 %v137, %v186
    %v191 = vmul.f32 %v136, %v187
    %v192 = vadd.f32 %v183, %v190
    %v193 = vadd.f32 %v184, %v191
    %v195 = vperm.slane %v98, 0
    %v196 = vperm.slane %v98, 1
    %v199 = vmul.f32 %v148, %v195
    %v200 = vmul.f32 %v149, %v196
    %v202 = vperm.slane %v99, 0
    %v203 = vperm.slane %v99, 1
    %v204 = vrot.slane %v203, 6
    %v205 = vsel %vm173, %v202, %v204
    %v207 = vmul.f32 %v110, %v205
    %209 = vst [vmem:[#allocation1] ss:$4 sm:$0xff] %v207
    %v210 = vld.sshfl [vmem:[#allocation1] sm:$0xff pattern:$0x73625140]
    %v211 = vld.sshfl [vmem:[#allocation1 + $0x8] sm:$0xff pattern:$0x73625140]
    %v214 = vadd.f32 %v199, %v210
    %v215 = vadd.f32 %v200, %v211
    %v217 = vperm.slane %v100, 0
    %v218 = vperm.slane %v100, 1
    %v221 = vmul.f32 %v161, %v217
    %v222 = vmul.f32 %v160, %v218
    %v223 = vadd.f32 %v214, %v221
    %v224 = vadd.f32 %v215, %v222
    %v225 = vmul.f32 %v192, %v192
    %v226 = vmul.f32 %v193, %v193
    %v227 = vmul.f32 %v223, %v223
    %v228 = vmul.f32 %v224, %v224
    %v229 = vadd.f32 %v225, %v227
    %v230 = vadd.f32 %v226, %v228
    %v231 = vsel %vm173, %v229, 0.0
    %v232 = vrot.slane %v231, 4
    %v233 = vadd.f32 %v231, %v232
    %v234 = vrot.slane %v233, 2
    %v235 = vadd.f32 %v233, %v234
    %v236 = vrot.slane %v235, 1
    %v237 = vadd.f32 %v235, %v236
    %v238 = vsel %vm173, %v230, 0.0
    %v239 = vrot.slane %v238, 4
    %v240 = vadd.f32 %v238, %v239
    %v241 = vrot.slane %v240, 2
    %v242 = vadd.f32 %v240, %v241
    %v243 = vrot.slane %v242, 1
    %v244 = vadd.f32 %v242, %v243
    %v247 = vrot.slane %v244, 7
    %vm248 = vcmask 1040384
    %v249 = vsel %vm248, %v237, %v247
    %v251 = vadd.f32 %v106, %v249
    %252 = vst.msk [vmem:[#allocation11] sm:$0x3] %vm104, %v251
    // Predicated region
    $region50: #{tpu_custom_call.1} parent=1 // pred_check
      _
    $region51: #{tpu_custom_call.1} parent=1 // pred_check_branch
      %254 = sbr.rel (0) target = $region53
    $region52: #{tpu_custom_call.1} parent=1 // pred_region
      %256 = vsyncadd [#allocation4], 0
      %s258 = sshll.u32 [#allocation11], 4
      %s259 = int_to_ptr.vmem [resolvable:$true] %s258
      %s260 = sshll.u32 %s7, 4
      %s261 = int_to_ptr.hbm [resolvable:$true] %s260
      %263 = dma.vmem_to_hbm [thread:$0]  %s259, 32, %s261, [#allocation4]
    $region53: #{tpu_custom_call.1} parent=1 // pred_fallthru
      _
    // Predicated region
    $region54: #{tpu_custom_call.1} parent=1 // pred_check
      _
    $region55: #{tpu_custom_call.1} parent=1 // pred_check_branch
      %265 = sbr.rel (0) target = $region57
    $region56: #{tpu_custom_call.1} parent=1 // pred_region
      %267 = dma.done [#allocation4], 32
    $region57: #{tpu_custom_call.1} parent=1 // pred_fallthru
      _
    %268 = vsyncpa [#allocation3], 1
    %269 = vsyncpa [#allocation6], 1
    %270 = vsyncpa [#allocation9], 1
    %271 = vsyncpa [#allocation4], 1

</llo_original>
